<compile_context>
chip_gen: v7x
topology: tpu7x:2x2x1
jax: 0.10.0
libtpu: 0.0.40
codegen_flags: <defaults>
</compile_context>

<pallas_src>
import jax
import jax.numpy as jnp
from jax import lax
from jax.experimental import pallas as pl
from jax.experimental.pallas import tpu as pltpu


# Section offsets (sublane rows) inside the packed (64, 20) parameter slab.
# All offsets are multiples of 8 so the in-kernel slices are aligned views.
_FW_OFF = 0     # fused_w = W^T @ R      rows  0..19
_WT_OFF = 24    # w_t     = W^T          rows 24..43
_FB_OFF = 48    # fused_b = b @ R + 1    row  48
_B_OFF = 56     # b                      row  56
_SLAB_ROWS = 64
_F = 20


def fixed_hidden_mlp_kernel(x_ref, p_ref, out_ref):
    """Whole forward pass in one gridless kernel invocation.

    x_ref  : (B, 20)  input activations                         (VMEM)
    p_ref  : (64, 20) packed parameter slab (offsets above)      (VMEM)
    out_ref: (1, 1)   result == sum(X) after all halvings        (SMEM)
    """
    x = x_ref[...]

    fused_w = p_ref[_FW_OFF:_FW_OFF + _F, :]      # (20, 20) = W^T @ R
    w_t     = p_ref[_WT_OFF:_WT_OFF + _F, :]      # (20, 20) = W^T
    fused_b = p_ref[_FB_OFF:_FB_OFF + 1, :]       # (1, 20)  = b @ R + 1
    b       = p_ref[_B_OFF:_B_OFF + 1, :]         # (1, 20)

    # Layers 1+2 fused: relu((x @ W^T + b) @ R + 1) == relu(x @ (W^T R) + (b R + 1))
    x2 = jnp.maximum(
        jnp.dot(x, fused_w, preferred_element_type=jnp.float32) + fused_b, 0.0)

    # Second application of the shared linear layer: x2 @ W^T + b
    # (W^T is pre-transposed host-side, so this is a plain MXU matmul).
    x3 = jnp.dot(x2, w_t, preferred_element_type=jnp.float32) + b

    # while X.abs().sum() > 1: X /= 2 ; return X.sum()
    # Halving the array halves both abs-sum and sum exactly in fp32, so carry
    # the two scalars.  Trip count n = smallest n >= 0 with abs_sum*2^-n <= 1;
    # with abs_sum = m * 2^e, m in [1,2):  n = max(0, e + (m != 1)),
    # read directly off the fp32 exponent/mantissa bits (bit-exact, no
    # log2/exp2 approximation, no data-dependent loop).
    abs_sum = jnp.sum(jnp.abs(x3), keepdims=True)            # (1, 1)
    total   = jnp.sum(x3, keepdims=True)                     # (1, 1)

    bits = pltpu.bitcast(abs_sum, jnp.uint32)                # raw fp32 bits (sign is 0)
    exp = (bits >> 23).astype(jnp.int32) - 127               # unbiased exponent e
    frac_nz = (bits & jnp.uint32(0x7FFFFF)) != jnp.uint32(0)
    n = exp + frac_nz.astype(jnp.int32)                      # halvings the loop would run
    n = jnp.clip(n, 0, 126)
    # Build 2^-n exactly from its bit pattern (biased exponent = 127 - n).
    scale = pltpu.bitcast((127 - n) << 23, jnp.float32)

    result = total * scale                                   # (1, 1)
    out_ref[0, 0] = result[0, 0]                             # scalar -> SMEM output


def prepare_params(w, b, rand_weight):
    """One-time fold (per weight update): pre-transpose W, fuse layers 1+2,
    and pack everything into a single 8-sublane-aligned slab so the kernel
    issues one parameter DMA instead of four."""
    w_t = jnp.asarray(w, jnp.float32).T                      # (in, out) = W^T
    fused_w = jnp.dot(w_t, rand_weight)                      # (20, 20) = W^T @ R
    fused_b = jnp.dot(jnp.asarray(b, jnp.float32), rand_weight) + 1.0   # (20,)
    slab = jnp.zeros((_SLAB_ROWS, _F), jnp.float32)
    slab = slab.at[_FW_OFF:_FW_OFF + _F, :].set(fused_w)
    slab = slab.at[_WT_OFF:_WT_OFF + _F, :].set(w_t)
    slab = slab.at[_FB_OFF, :].set(fused_b)
    slab = slab.at[_B_OFF, :].set(jnp.asarray(b, jnp.float32))
    return slab


@jax.jit
def fixed_hidden_mlp(x, params_slab):
    """x: (B, 20) f32; params_slab from prepare_params(). Returns a scalar."""
    out = pl.pallas_call(
        fixed_hidden_mlp_kernel,
        out_shape=jax.ShapeDtypeStruct((1, 1), jnp.float32),
        in_specs=[pl.BlockSpec(memory_space=pltpu.MemorySpace.VMEM),
                  pl.BlockSpec(memory_space=pltpu.MemorySpace.VMEM)],
        out_specs=pl.BlockSpec(memory_space=pltpu.MemorySpace.SMEM),
    )(x, params_slab)
    return out[0, 0]      # squeezed inside this same jit -> no extra dispatch


if __name__ == "__main__":
    key = jax.random.PRNGKey(0)
    k_x, k_w, k_b, k_r = jax.random.split(key, 4)

    B, F = 2, 20  # Linear(20) applied twice to its own output => in_features = 20

    x = jax.random.normal(k_x, (B, F), dtype=jnp.float32)
    # nn.Linear-style init: uniform(-1/sqrt(fan_in), 1/sqrt(fan_in))
    bound = 1.0 / jnp.sqrt(jnp.float32(F))
    w = jax.random.uniform(k_w, (20, F), minval=-bound, maxval=bound,
                           dtype=jnp.float32)          # (out, in)
    b = jax.random.uniform(k_b, (20,), minval=-bound, maxval=bound,
                           dtype=jnp.float32)
    # torch.rand((20, 20)) -> uniform [0, 1)
    rand_weight = jax.random.uniform(k_r, (20, 20), dtype=jnp.float32)

    params = prepare_params(w, b, rand_weight)   # once per weight update
    result = fixed_hidden_mlp(x, params)
    jax.block_until_ready(result)

    # pure-JAX reference: the original (unfused, while-loop) semantics.
    def ref(x, w, b, r):
        x1 = x @ w.T + b
        x2 = jax.nn.relu(x1 @ r + 1.0)
        x3 = x2 @ w.T + b
        x3 = lax.while_loop(lambda c: jnp.sum(jnp.abs(c)) > 1.0,
                            lambda c: c / 2.0, x3)
        return jnp.sum(x3)

    expected = ref(x, w, b, rand_weight)
    assert jnp.allclose(result, expected, rtol=1e-4, atol=1e-4), (result, expected)

    print("KERNEL_OK")
</pallas_src>

<mosaic_0001>
module attributes {stable_mosaic.version = 11 : i64} {
  func.func @fixed_hidden_mlp_kernel(%arg0: memref<2x20xf32, #tpu.memory_space<vmem>>, %arg1: memref<64x20xf32, #tpu.memory_space<vmem>>, %arg2: memref<1x1xf32, #tpu.memory_space<smem>>) attributes {dimension_semantics = [], scalar_prefetch = 0 : i64, scratch_operands = 0 : i64, tpu.core_type = #tpu.core_type<tc>} {
    %c0 = arith.constant 0 : index
    %c0_0 = arith.constant 0 : index
    %0 = vector.load %arg0[%c0, %c0_0] : memref<2x20xf32, #tpu.memory_space<vmem>>, vector<2x20xf32>
    %c0_1 = arith.constant 0 : index
    %c0_2 = arith.constant 0 : index
    %1 = vector.load %arg1[%c0_1, %c0_2] : memref<64x20xf32, #tpu.memory_space<vmem>>, vector<20x20xf32>
    %c24 = arith.constant 24 : index
    %c0_3 = arith.constant 0 : index
    %2 = vector.load %arg1[%c24, %c0_3] : memref<64x20xf32, #tpu.memory_space<vmem>>, vector<20x20xf32>
    %c48 = arith.constant 48 : index
    %c0_4 = arith.constant 0 : index
    %3 = vector.load %arg1[%c48, %c0_4] : memref<64x20xf32, #tpu.memory_space<vmem>>, vector<1x20xf32>
    %c56 = arith.constant 56 : index
    %c0_5 = arith.constant 0 : index
    %4 = vector.load %arg1[%c56, %c0_5] : memref<64x20xf32, #tpu.memory_space<vmem>>, vector<1x20xf32>
    %cst = arith.constant dense<0.000000e+00> : vector<2x20xf32>
    %5 = tpu.matmul %0, %1, %cst {dimension_numbers = #tpu.dot_dimension_numbers<[1], [0], [0], [1], [0, 0, 1, 1], [], []>} : vector<2x20xf32>, vector<20x20xf32>, vector<2x20xf32> -> vector<2x20xf32>
    %6 = vector.broadcast %3 : vector<1x20xf32> to vector<2x20xf32>
    %7 = arith.addf %5, %6 : vector<2x20xf32>
    %cst_6 = arith.constant 0.000000e+00 : f32
    %8 = vector.broadcast %cst_6 : f32 to vector<2x20xf32>
    %9 = arith.maximumf %7, %8 : vector<2x20xf32>
    %cst_7 = arith.constant dense<0.000000e+00> : vector<2x20xf32>
    %10 = tpu.matmul %9, %2, %cst_7 {dimension_numbers = #tpu.dot_dimension_numbers<[1], [0], [0], [1], [0, 0, 1, 1], [], []>} : vector<2x20xf32>, vector<20x20xf32>, vector<2x20xf32> -> vector<2x20xf32>
    %11 = vector.broadcast %4 : vector<1x20xf32> to vector<2x20xf32>
    %12 = arith.addf %10, %11 : vector<2x20xf32>
    %13 = math.absf %12 : vector<2x20xf32>
    %14 = vector.shape_cast %13 : vector<2x20xf32> to vector<1x2x20xf32>
    %cst_8 = arith.constant dense<0.000000e+00> : vector<1xf32>
    %15 = vector.multi_reduction <add>, %14, %cst_8 [1, 2] : vector<1x2x20xf32> to vector<1xf32>
    %16 = vector.shape_cast %15 : vector<1xf32> to vector<1x1x1xf32>
    %17 = vector.extract %16[0, 0, 0] : f32 from vector<1x1x1xf32>
    %18 = vector.broadcast %17 : f32 to vector<1x1xf32>
    %19 = vector.shape_cast %12 : vector<2x20xf32> to vector<1x2x20xf32>
    %cst_9 = arith.constant dense<0.000000e+00> : vector<1xf32>
    %20 = vector.multi_reduction <add>, %19, %cst_9 [1, 2] : vector<1x2x20xf32> to vector<1xf32>
    %21 = vector.shape_cast %20 : vector<1xf32> to vector<1x1x1xf32>
    %22 = vector.extract %21[0, 0, 0] : f32 from vector<1x1x1xf32>
    %23 = vector.broadcast %22 : f32 to vector<1x1xf32>
    %24 = tpu.bitcast %18 : vector<1x1xf32> -> vector<1x1xi32>
    %c23_i32 = arith.constant 23 : i32
    %25 = vector.broadcast %c23_i32 : i32 to vector<1x1xi32>
    %26 = arith.shrui %24, %25 : vector<1x1xi32>
    %c127_i32 = arith.constant 127 : i32
    %27 = vector.broadcast %c127_i32 : i32 to vector<1x1xi32>
    %28 = arith.subi %26, %27 : vector<1x1xi32>
    %c8388607_i32 = arith.constant 8388607 : i32
    %29 = vector.broadcast %c8388607_i32 : i32 to vector<1x1xi32>
    %30 = arith.andi %24, %29 : vector<1x1xi32>
    %c0_i32 = arith.constant 0 : i32
    %31 = vector.broadcast %c0_i32 : i32 to vector<1x1xi32>
    %32 = arith.cmpi ne, %30, %31 : vector<1x1xi32>
    %33 = arith.extui %32 : vector<1x1xi1> to vector<1x1xi32>
    %34 = arith.addi %28, %33 : vector<1x1xi32>
    %c0_i32_10 = arith.constant 0 : i32
    %c126_i32 = arith.constant 126 : i32
    %35 = vector.broadcast %c0_i32_10 : i32 to vector<1x1xi32>
    %36 = arith.maxsi %35, %34 : vector<1x1xi32>
    %37 = vector.broadcast %c126_i32 : i32 to vector<1x1xi32>
    %38 = arith.minsi %37, %36 : vector<1x1xi32>
    %c127_i32_11 = arith.constant 127 : i32
    %39 = vector.broadcast %c127_i32_11 : i32 to vector<1x1xi32>
    %40 = arith.subi %39, %38 : vector<1x1xi32>
    %c23_i32_12 = arith.constant 23 : i32
    %41 = vector.broadcast %c23_i32_12 : i32 to vector<1x1xi32>
    %42 = arith.shli %40, %41 : vector<1x1xi32>
    %43 = tpu.bitcast %42 : vector<1x1xi32> -> vector<1x1xf32>
    %44 = arith.mulf %23, %43 : vector<1x1xf32>
    %45 = vector.extract %44[0, 0] : f32 from vector<1x1xf32>
    %c0_13 = arith.constant 0 : index
    %c0_14 = arith.constant 0 : index
    %46 = memref.load %arg2[%c0_13, %c0_14] : memref<1x1xf32, #tpu.memory_space<smem>>
    memref.store %45, %arg2[%c0_13, %c0_14] : memref<1x1xf32, #tpu.memory_space<smem>>
    return
  }
}

</mosaic_0001>

<llo_original>
// kernel: fixed_hidden_mlp.1
$region0: #{fixed_hidden_mlp.1}
  #allocation0 [shape = 'u32[]', space=smem, size = 0x4, offset = 0x4, fixed_abs, tag = 'smem constant byte address 0x4 - core index']
  #allocation1 [shape = 'u32[144,128]{1,0:T(1,128)}', space=vmem, size = 0x12000, scoped, tag = 'internal scratch']
  %s0 = inlined_call_operand.vmem [shape: f32[2,20], index: 0, kind: input, shape index: {}]
  %s1 = inlined_call_operand.vmem [shape: f32[64,20], index: 1, kind: input, shape index: {}]
  %s2 = inlined_call_operand.hbm [shape: f32[1,1], index: 2, kind: output, shape index: {}]
  %s3 = sld [smem:[#allocation0]]
  $region18: #{fixed_hidden_mlp.1} parent=0
    _
  %s5 = ssub.s32 1, %s3
  %s6 = scalar_select 0, %s5, %s3
  $region1: #{fixed_hidden_mlp.1} parent=0
    #allocation2 [shape = 'u8[512]{0}', space=smem, size = 0x200, scoped, tag = 'output window, operand 0, single buffered']
    #allocation3 [shape = 's32[1]{0}', space=sflag, size = 0x4, scoped, tag = 'scoped memory for fixed_hidden_mlp.1']
    %7 = vsyncpa [#allocation3], 0
    // Predicated region
    $region2: #{fixed_hidden_mlp.1} parent=1 // pred_check
      _
    $region3: #{fixed_hidden_mlp.1} parent=1 // pred_check_branch
      %9 = sbr.rel (0) target = $region5
    $region4: #{fixed_hidden_mlp.1} parent=1 // pred_region
      _
    $region5: #{fixed_hidden_mlp.1} parent=1 // pred_fallthru
      _
    // Predicated region
    $region6: #{fixed_hidden_mlp.1} parent=1 // pred_check
      _
    $region7: #{fixed_hidden_mlp.1} parent=1 // pred_check_branch
      %11 = sbr.rel (0) target = $region9
    $region8: #{fixed_hidden_mlp.1} parent=1 // pred_region
      _
    $region9: #{fixed_hidden_mlp.1} parent=1 // pred_fallthru
      _
    %v12 = vld [vmem:[%s0] sm:$0x3]
    %v13 = vld [vmem:[%s1] sm:$0xff]
    %v14 = vld [vmem:[%s1 + $0x8] sm:$0xff]
    %v15 = vld [vmem:[%s1 + $0x10] sm:$0xf]
    %v16 = vld [vmem:[%s1 + $0x18] sm:$0xff]
    %v17 = vld [vmem:[%s1 + $0x20] sm:$0xff]
    %v18 = vld [vmem:[%s1 + $0x28] sm:$0xf]
    %v19 = vld [vmem:[%s1 + $0x30] sm:$0x1]
    %v20 = vld [vmem:[%s1 + $0x38] sm:$0x1]
    %v21 = vlaneseq
    %v22 = vshrl.u32 %v21, 7
    %v23 = vsub.s32 0, %v22
    %v24 = vrot.slane %v19, %v23
    %vm25 = vcmask 162816
    %v27 = vsel %vm25, %v12, 0
    %vm29 = vcmask 1043456
    %v31 = vsel %vm29, %v15, 0
    %33 = vmatprep.subr.mxu0 0.0
    %34 = vmatpush1.msra.mxu0 %v13
    %35 = vmatprep.subr.mxu0 0.0
    %36 = vmatpush1.msra.mxu0 %v14
    %37 = vmatprep.subr.mxu0 0.0
    %38 = vmatpush1.msra.mxu0 %v31
    %39 = vmatprep.subr.mxu0 0.0
    %40 = vmatpush1.msra.mxu0 0.0
    %41 = vmatprep.subr.mxu0 0.0
    %42 = vmatpush1.msra.mxu0 0.0
    %43 = vmatprep.subr.mxu0 0.0
    %44 = vmatpush1.msra.mxu0 0.0
    %45 = vmatprep.subr.mxu0 0.0
    %46 = vmatpush1.msra.mxu0 0.0
    %47 = vmatprep.subr.mxu0 0.0
    %48 = vmatpush1.msra.mxu0 0.0
    %49 = vmatprep.subr.mxu0 0.0
    %50 = vmatpush1.msra.mxu0 0.0
    %51 = vmatprep.subr.mxu0 0.0
    %52 = vmatpush1.msra.mxu0 0.0
    %53 = vmatprep.subr.mxu0 0.0
    %54 = vmatpush1.msra.mxu0 0.0
    %55 = vmatprep.subr.mxu0 0.0
    %56 = vmatpush1.msra.mxu0 0.0
    %57 = vmatprep.subr.mxu0 0.0
    %58 = vmatpush1.msra.mxu0 0.0
    %59 = vmatprep.subr.mxu0 0.0
    %60 = vmatpush1.msra.mxu0 0.0
    %61 = vmatprep.subr.mxu0 0.0
    %62 = vmatpush1.msra.mxu0 0.0
    %63 = vmatprep.subr.mxu0 0.0
    %64 = vmatpush1.msra.mxu0 0.0
    %65 = vmatprep.subr.mxu0 0.0
    %66 = vmatpush1.msra.mxu0 0.0
    %67 = vmatprep.subr.mxu0 0.0
    %68 = vmatpush1.msra.mxu0 0.0
    %69 = vmatprep.subr.mxu0 0.0
    %70 = vmatpush1.msra.mxu0 0.0
    %71 = vmatprep.subr.mxu0 0.0
    %72 = vmatpush1.msra.mxu0 0.0
    %73 = vmatprep.subr.mxu0 0.0
    %74 = vmatpush1.msra.mxu0 0.0
    %75 = vmatprep.subr.mxu0 0.0
    %76 = vmatpush1.msra.mxu0 0.0
    %77 = vmatprep.subr.mxu0 0.0
    %78 = vmatpush1.msra.mxu0 0.0
    %79 = vmatprep.subr.mxu0 0.0
    %80 = vmatpush1.msra.mxu0 0.0
    %81 = vmatprep.subr.mxu0 0.0
    %82 = vmatpush1.msra.mxu0 0.0
    %83 = vmatprep.subr.mxu0 0.0
    %84 = vmatpush1.msra.mxu0 0.0
    %85 = vmatprep.subr.mxu0 0.0
    %86 = vmatpush1.msra.mxu0 0.0
    %87 = vmatprep.subr.mxu0 0.0
    %88 = vmatpush1.msra.mxu0 0.0
    %89 = vmatprep.subr.mxu0 0.0
    %90 = vmatpush1.msra.mxu0 0.0
    %91 = vmatprep.subr.mxu0 0.0
    %92 = vmatpush1.msra.mxu0 0.0
    %93 = vmatprep.subr.mxu0 0.0
    %94 = vmatpush1.msra.mxu0 0.0
    %95 = vmatprep.subr.mxu0 0.0
    %96 = vmatpush1.msra.mxu0 0.0
    %97 = vmatprep.mubr.f32.mxu0 0.0
    %98 = vmatmul.mubr.f32.gmra.mrb[0].mxu0 %v27
    %v99 = vpop.f32.mrb[0].mxu0
    %v100 = vadd.f32 %v24, %v99
    %v101 = vpop.f32.mrb[0].mxu0
    %102 = vdwg.mxu0
    %v103 = vmax.f32 %v100, 0.0
    %v104 = vlaneseq
    %v105 = vshrl.u32 %v104, 7
    %v106 = vsub.s32 0, %v105
    %v107 = vrot.slane %v20, %v106
    %v109 = vsel %vm25, %v103, 0
    %v112 = vsel %vm29, %v18, 0
    %114 = vmatprep.subr.mxu0 0.0
    %115 = vmatpush1.msra.mxu0 %v16
    %116 = vmatprep.subr.mxu0 0.0
    %117 = vmatpush1.msra.mxu0 %v17
    %118 = vmatprep.subr.mxu0 0.0
    %119 = vmatpush1.msra.mxu0 %v112
    %120 = vmatprep.subr.mxu0 0.0
    %121 = vmatpush1.msra.mxu0 0.0
    %122 = vmatprep.subr.mxu0 0.0
    %123 = vmatpush1.msra.mxu0 0.0
    %124 = vmatprep.subr.mxu0 0.0
    %125 = vmatpush1.msra.mxu0 0.0
    %126 = vmatprep.subr.mxu0 0.0
    %127 = vmatpush1.msra.mxu0 0.0
    %128 = vmatprep.subr.mxu0 0.0
    %129 = vmatpush1.msra.mxu0 0.0
    %130 = vmatprep.subr.mxu0 0.0
    %131 = vmatpush1.msra.mxu0 0.0
    %132 = vmatprep.subr.mxu0 0.0
    %133 = vmatpush1.msra.mxu0 0.0
    %134 = vmatprep.subr.mxu0 0.0
    %135 = vmatpush1.msra.mxu0 0.0
    %136 = vmatprep.subr.mxu0 0.0
    %137 = vmatpush1.msra.mxu0 0.0
    %138 = vmatprep.subr.mxu0 0.0
    %139 = vmatpush1.msra.mxu0 0.0
    %140 = vmatprep.subr.mxu0 0.0
    %141 = vmatpush1.msra.mxu0 0.0
    %142 = vmatprep.subr.mxu0 0.0
    %143 = vmatpush1.msra.mxu0 0.0
    %144 = vmatprep.subr.mxu0 0.0
    %145 = vmatpush1.msra.mxu0 0.0
    %146 = vmatprep.subr.mxu0 0.0
    %147 = vmatpush1.msra.mxu0 0.0
    %148 = vmatprep.subr.mxu0 0.0
    %149 = vmatpush1.msra.mxu0 0.0
    %150 = vmatprep.subr.mxu0 0.0
    %151 = vmatpush1.msra.mxu0 0.0
    %152 = vmatprep.subr.mxu0 0.0
    %153 = vmatpush1.msra.mxu0 0.0
    %154 = vmatprep.subr.mxu0 0.0
    %155 = vmatpush1.msra.mxu0 0.0
    %156 = vmatprep.subr.mxu0 0.0
    %157 = vmatpush1.msra.mxu0 0.0
    %158 = vmatprep.subr.mxu0 0.0
    %159 = vmatpush1.msra.mxu0 0.0
    %160 = vmatprep.subr.mxu0 0.0
    %161 = vmatpush1.msra.mxu0 0.0
    %162 = vmatprep.subr.mxu0 0.0
    %163 = vmatpush1.msra.mxu0 0.0
    %164 = vmatprep.subr.mxu0 0.0
    %165 = vmatpush1.msra.mxu0 0.0
    %166 = vmatprep.subr.mxu0 0.0
    %167 = vmatpush1.msra.mxu0 0.0
    %168 = vmatprep.subr.mxu0 0.0
    %169 = vmatpush1.msra.mxu0 0.0
    %170 = vmatprep.subr.mxu0 0.0
    %171 = vmatpush1.msra.mxu0 0.0
    %172 = vmatprep.subr.mxu0 0.0
    %173 = vmatpush1.msra.mxu0 0.0
    %174 = vmatprep.subr.mxu0 0.0
    %175 = vmatpush1.msra.mxu0 0.0
    %176 = vmatprep.subr.mxu0 0.0
    %177 = vmatpush1.msra.mxu0 0.0
    %178 = vmatprep.mubr.f32.mxu0 0.0
    %179 = vmatmul.mubr.f32.gmra.mrb[0].mxu0 %v109
    %v180 = vpop.f32.mrb[0].mxu0
    %v181 = vadd.f32 %v107, %v180
    %v182 = vpop.f32.mrb[0].mxu0
    %183 = vdwg.mxu0
    %v184 = vand.u32 2147483647, %v181
    %vm185 = vcmask 156672
    %v186 = vsel %vm185, %v184, 0.0
    %187 = vadd.xlane.f32.xlu0 %v186
    %v188 = vpop.xlane.xlu0 %187
    %v189 = vrot.slane %v188, 4
    %v190 = vadd.f32 %v188, %v189
    %v191 = vrot.slane %v190, 2
    %v192 = vadd.f32 %v190, %v191
    %v193 = vrot.slane %v192, 1
    %v194 = vadd.f32 %v192, %v193
    %s195 = vtos %v194
    %v196 = vstv %s195
    %v197 = vsel %vm185, %v181, 0.0
    %198 = vadd.xlane.f32.xlu0 %v197
    %v199 = vpop.xlane.xlu0 %198
    %v200 = vrot.slane %v199, 4
    %v201 = vadd.f32 %v199, %v200
    %v202 = vrot.slane %v201, 2
    %v203 = vadd.f32 %v201, %v202
    %v204 = vrot.slane %v203, 1
    %v205 = vadd.f32 %v203, %v204
    %s206 = vtos %v205
    %v207 = vstv %s206
    %v209 = vshrl.u32 %v196, 23
    %v210 = vsub.s32 %v209, 127
    %v211 = vand.u32 %v196, 8388607
    %vm212 = vcmp.ne.s32.totalorder %v211, 0
    %v213 = vsel %vm212, 1, 0
    %v214 = vadd.s32 %v210, %v213
    %vm215 = vcmp.gt.s32.totalorder %v214, 0
    %v216 = vsel %vm215, %v214, 0
    %vm217 = vcmp.lt.s32.totalorder %v216, 126
    %v218 = vsel %vm217, %v216, 126
    %v219 = vsub.s32 127, %v218
    %v220 = vshll.u32 %v219, 23
    %v222 = vmul.f32 %v207, %v220
    %s223 = vtos %v222
    %s224 = scalar_lea.smem [#allocation2], 0
    %225 = sst [smem:[%s224]] %s223
    // Predicated region
    $region10: #{fixed_hidden_mlp.1} parent=1 // pred_check
      _
    $region11: #{fixed_hidden_mlp.1} parent=1 // pred_check_branch
      %227 = sbr.rel (0) target = $region13
    $region12: #{fixed_hidden_mlp.1} parent=1 // pred_region
      %s229 = ssub.s32 16, 16
      %230 = vsyncadd [#allocation3], %s229
      %233 = dma.smem_to_hbm [#allocation2], 16, %s2, [#allocation3]
    $region13: #{fixed_hidden_mlp.1} parent=1 // pred_fallthru
      _
    // Predicated region
    $region14: #{fixed_hidden_mlp.1} parent=1 // pred_check
      _
    $region15: #{fixed_hidden_mlp.1} parent=1 // pred_check_branch
      %235 = sbr.rel (0) target = $region17
    $region16: #{fixed_hidden_mlp.1} parent=1 // pred_region
      %236 = dma.done [#allocation3], 16
    $region17: #{fixed_hidden_mlp.1} parent=1 // pred_fallthru
      _
    %237 = sfence
    %238 = vsyncpa [#allocation3], 1

</llo_original>
